<compile_context>
chip_gen: v7x
topology: tpu7x:2x2x1
jax: 0.10.0
libtpu: 0.0.40
codegen_flags: <defaults>
</compile_context>

<pallas_src>
import math

import jax
import jax.numpy as jnp
from jax.experimental import pallas as pl
from jax.experimental.pallas import tpu as pltpu


def _broadcast_add_kernel(lang_ref, emb_ref, out_ref):
    # lang_ref: (TM, C) streamed row tile; emb_ref: (1, C) resident row.
    out_ref[...] = (lang_ref[...] + emb_ref[...]).astype(out_ref.dtype)


def _vmem_capacity_bytes():
    """Physical VMEM of the attached TPU (fallback: 128 MiB, i.e. v5e/v6e)."""
    try:
        info = pltpu.get_tpu_info()
        for name in ("vmem_capacity_bytes", "vmem_size_bytes", "vmem_bytes"):
            v = getattr(info, name, None)
            if v:
                return int(v)
    except Exception:
        pass
    return 128 * 1024 * 1024


def _tile_budget_and_vmem_limit():
    """Generation-aware per-buffer tile budget + scoped-VMEM request.

    v7x has only 64 MiB physical VMEM (vs 128 MiB on v5e/v6e): keep per-buffer
    tiles ~6 MiB there (2x in + 2x out + emb row << 40 MiB request).  On
    128 MiB parts use ~8 MiB tiles / 48 MiB request (~85-86% of HBM roofline).
    """
    vmem = _vmem_capacity_bytes()
    if vmem <= 64 * 1024 * 1024:  # v7x-class
        return 6 * 1024 * 1024, 40 * 1024 * 1024
    return 8 * 1024 * 1024, 48 * 1024 * 1024


def _sublane_multiple(itemsize):
    # Sub-32-bit dtypes pack along sublanes: f32 -> 8, bf16 -> 16, int8 -> 32.
    return max(8, (32 // max(1, itemsize)) * 8)


def _choose_row_tile(rows, cols, itemsize, budget_bytes):
    """Per-step row-tile height.

    * derived from the byte budget (no hard row cap), rounded to the dtype's
      sublane packing
    * capped so there are always >= 2 grid steps when rows allow it, so the
      "parallel" grid axis can be sharded across v7x's two TensorCores.
    """
    sub = _sublane_multiple(itemsize)
    if rows <= sub:
        return rows                          # single full-extent block (legal)
    tm = budget_bytes // max(1, cols * itemsize)
    tm = max(sub, (tm // sub) * sub)
    half = -(-rows // 2)                     # ceil(rows / 2)
    half = -(-half // sub) * sub             # round up to sublane multiple (< rows)
    return min(tm, half)


def _pallas_broadcast_add(lang2, emb_slab, tm, vmem_limit, single_buffer_emb):
    rows, cols = lang2.shape
    if single_buffer_emb:
        # emb row's block index never changes -> double-buffering buys nothing.
        emb_spec = pl.BlockSpec((1, cols), lambda i: (0, 0),
                                pipeline_mode=pl.Buffered(1))
    else:
        emb_spec = pl.BlockSpec((1, cols), lambda i: (0, 0))
    return pl.pallas_call(
        _broadcast_add_kernel,
        out_shape=jax.ShapeDtypeStruct((rows, cols), lang2.dtype),
        grid=(pl.cdiv(rows, tm),),
        in_specs=[pl.BlockSpec((tm, cols), lambda i: (i, 0)), emb_spec],
        out_specs=pl.BlockSpec((tm, cols), lambda i: (i, 0)),
        # Pure elementwise update: lets XLA reuse lang's HBM buffer when it is
        # donated / dead after this op.
        input_output_aliases={0: 0},
        compiler_params=pltpu.CompilerParams(
            dimension_semantics=("parallel",),
            vmem_limit_bytes=vmem_limit,
        ),
    )(lang2, emb_slab)


def dataset_learned_encoding(lang, emb_weight, dataset_idx, *, force_pallas=False):
    """lang: (B, L, D); emb_weight: (N, D); dataset_idx: static Python int."""
    B, L, D = lang.shape
    # NOTE: cast to lang.dtype (bf16 lang -> bf16 out); PyTorch would promote.
    emb_row = emb_weight[dataset_idx].astype(lang.dtype)

    total_bytes = lang.size * lang.dtype.itemsize
    if not force_pallas and total_bytes < (1 << 20):
        # Small input: fused XLA broadcast-add beats pallas_call fixed cost.
        # (In production, prefer fusing this add into a neighboring kernel.)
        return lang + emb_row[None, None, :]

    rows = B * L
    total = rows * D
    itemsize = lang.dtype.itemsize
    budget_bytes, vmem_limit = _tile_budget_and_vmem_limit()

    tail2 = None
    if D % 128 == 0:
        cols, reps = D, 1
        prefix2 = lang.reshape(rows, D)
    else:
        lane = (D * 128) // math.gcd(D, 128)      # lcm(D, 128)
        reps = lane // D
        n_fold = total // lane                    # lane-dense prefix rows
        if n_fold == 0:
            # Too small to form one lane-dense row: plain XLA add.
            return lang + emb_row[None, None, :]
        cols = lane
        lang_flat = lang.reshape(-1)
        prefix2 = lang_flat[: n_fold * lane].reshape(n_fold, lane)
        tail_elems = total - n_fold * lane        # always a multiple of D
        if tail_elems:
            tail2 = lang_flat[n_fold * lane:].reshape(tail_elems // D, D)

    emb_slab = (jnp.tile(emb_row, reps) if reps > 1 else emb_row).reshape(1, cols)

    tm = _choose_row_tile(prefix2.shape[0], cols, itemsize, budget_bytes)

    try:
        out2 = _pallas_broadcast_add(prefix2, emb_slab, tm, vmem_limit, True)
    except Exception:
        # pipeline_mode=Buffered(1) not supported on this jax build: retry with
        # the default (double-buffered) spec for the tiny emb row.
        out2 = _pallas_broadcast_add(prefix2, emb_slab, tm, vmem_limit, False)

    if tail2 is None:
        return out2.reshape(B, L, D)
    # Rare lane-ragged case: tiny tail handled by XLA, stitched back on.
    tail_out = tail2 + emb_row[None, :]
    out_rows = jnp.concatenate([out2.reshape(-1, D), tail_out], axis=0)
    return out_rows.reshape(B, L, D)


class DatasetLearnedEncodingJAX:
    """Mirror of the PyTorch module; parameters built deterministically."""

    def __init__(self, d_model, datasets, init_range=0.1, seed=0):
        self.datasets = {dataset: i for i, dataset in enumerate(datasets)}
        key = jax.random.PRNGKey(seed)
        self.emb_weight = jax.random.uniform(
            key, (len(datasets), d_model),
            minval=-init_range, maxval=init_range, dtype=jnp.float32)

    def __call__(self, lang, vocab_name, *, force_pallas=False):
        idx = self.datasets[vocab_name]
        return dataset_learned_encoding(
            lang, self.emb_weight, idx, force_pallas=force_pallas)


if __name__ == "__main__":
    # Small shapes consistent with the forward: batch=2, seq=8, d_model=32.
    B, L, D = 2, 8, 32
    datasets = ["alfred", "teach", "extra"]

    key = jax.random.PRNGKey(0)
    k_lang, _ = jax.random.split(key)
    lang = jax.random.normal(k_lang, (B, L, D), dtype=jnp.float32)

    module = DatasetLearnedEncodingJAX(D, datasets, init_range=0.1, seed=0)
    vocab_name = "teach"  # -> dataset index 1

    # Force the Pallas path so the kernel is actually exercised at demo size
    # (the wrapper would otherwise take the XLA fast path for 2 KB of data).
    out = module(lang, vocab_name, force_pallas=True)
    out = jax.block_until_ready(out)

    # Reference check in plain JAX (same semantics as the PyTorch forward).
    idx = module.datasets[vocab_name]
    ref = lang + module.emb_weight[idx][None, None, :]
    assert out.shape == (B, L, D)
    assert jnp.allclose(out, ref, atol=1e-6), "mismatch vs reference"

    print("KERNEL_OK")
</pallas_src>

<mosaic_0001>
module attributes {stable_mosaic.version = 11 : i64} {
  func.func @_broadcast_add_kernel(%arg0: i32, %arg1: memref<4x128xf32, #tpu.memory_space<vmem>>, %arg2: memref<1x128xf32, #tpu.memory_space<vmem>>, %arg3: memref<4x128xf32, #tpu.memory_space<vmem>>) attributes {dimension_semantics = [#tpu.dimension_semantics<parallel>], iteration_bounds = array<i64: 1>, scalar_prefetch = 0 : i64, scratch_operands = 0 : i64, tpu.core_type = #tpu.core_type<tc>, window_params = [{transform_indices = @transform_0, window_bounds = array<i64: 4, 128>}, {pipeline_mode = #tpu.pipeline_mode<synchronous>, transform_indices = @transform_1, window_bounds = array<i64: 1, 128>}, {transform_indices = @transform_2, window_bounds = array<i64: 4, 128>}]} {
    %c0 = arith.constant 0 : index
    %c0_0 = arith.constant 0 : index
    %0 = vector.load %arg1[%c0, %c0_0] : memref<4x128xf32, #tpu.memory_space<vmem>>, vector<4x128xf32>
    %c0_1 = arith.constant 0 : index
    %c0_2 = arith.constant 0 : index
    %1 = vector.load %arg2[%c0_1, %c0_2] : memref<1x128xf32, #tpu.memory_space<vmem>>, vector<1x128xf32>
    %2 = vector.broadcast %1 : vector<1x128xf32> to vector<4x128xf32>
    %3 = arith.addf %0, %2 : vector<4x128xf32>
    %c0_3 = arith.constant 0 : index
    %c0_4 = arith.constant 0 : index
    %4 = vector.load %arg3[%c0_3, %c0_4] : memref<4x128xf32, #tpu.memory_space<vmem>>, vector<4x128xf32>
    tpu.vector_store %arg3[%c0_3, %c0_4], %3 {strides = array<i32>} : memref<4x128xf32, #tpu.memory_space<vmem>>, vector<4x128xf32>,
    return
  }
  func.func @transform_0(%arg0: i32) -> (i32, i32) {
    %c0_i32 = arith.constant 0 : i32
    %c0_i32_0 = arith.constant 0 : i32
    return %arg0, %c0_i32 : i32, i32
  }
  func.func @transform_1(%arg0: i32) -> (i32, i32) {
    %c0_i32 = arith.constant 0 : i32
    %c0_i32_0 = arith.constant 0 : i32
    %c0_i32_1 = arith.constant 0 : i32
    return %c0_i32, %c0_i32_0 : i32, i32
  }
  func.func @transform_2(%arg0: i32) -> (i32, i32) {
    %c0_i32 = arith.constant 0 : i32
    %c0_i32_0 = arith.constant 0 : i32
    return %arg0, %c0_i32 : i32, i32
  }
}

module attributes {stable_mosaic.version = 11 : i64} {
  func.func @_broadcast_add_kernel(%arg0: i32, %arg1: memref<4x128xf32, #tpu.memory_space<vmem>>, %arg2: memref<1x128xf32, #tpu.memory_space<vmem>>, %arg3: memref<4x128xf32, #tpu.memory_space<vmem>>) attributes {dimension_semantics = [#tpu.dimension_semantics<parallel>], iteration_bounds = array<i64: 1>, scalar_prefetch = 0 : i64, scratch_operands = 0 : i64, tpu.core_type = #tpu.core_type<tc>, window_params = [{transform_indices = @transform_0, window_bounds = array<i64: 4, 128>}, {pipeline_mode = #tpu.pipeline_mode<synchronous>, transform_indices = @transform_1, window_bounds = array<i64: 1, 128>}, {transform_indices = @transform_2, window_bounds = array<i64: 4, 128>}]} {
    %c0 = arith.constant 0 : index
    %c0_0 = arith.constant 0 : index
    %0 = vector.load %arg1[%c0, %c0_0] : memref<4x128xf32, #tpu.memory_space<vmem>>, vector<4x128xf32>
    %c0_1 = arith.constant 0 : index
    %c0_2 = arith.constant 0 : index
    %1 = vector.load %arg2[%c0_1, %c0_2] : memref<1x128xf32, #tpu.memory_space<vmem>>, vector<1x128xf32>
    %2 = vector.broadcast %1 : vector<1x128xf32> to vector<4x128xf32>
    %3 = arith.addf %0, %2 : vector<4x128xf32>
    %c0_3 = arith.constant 0 : index
    %c0_4 = arith.constant 0 : index
    %4 = vector.load %arg3[%c0_3, %c0_4] : memref<4x128xf32, #tpu.memory_space<vmem>>, vector<4x128xf32>
    tpu.vector_store %arg3[%c0_3, %c0_4], %3 {strides = array<i32>} : memref<4x128xf32, #tpu.memory_space<vmem>>, vector<4x128xf32>,
    return
  }
  func.func @transform_0(%arg0: i32) -> (i32, i32) {
    %c0_i32 = arith.constant 0 : i32
    %c0_i32_0 = arith.constant 0 : i32
    return %arg0, %c0_i32 : i32, i32
  }
  func.func @transform_1(%arg0: i32) -> (i32, i32) {
    %c0_i32 = arith.constant 0 : i32
    %c0_i32_0 = arith.constant 0 : i32
    %c0_i32_1 = arith.constant 0 : i32
    return %c0_i32, %c0_i32_0 : i32, i32
  }
  func.func @transform_2(%arg0: i32) -> (i32, i32) {
    %c0_i32 = arith.constant 0 : i32
    %c0_i32_0 = arith.constant 0 : i32
    return %arg0, %c0_i32 : i32, i32
  }
}

</mosaic_0001>

<llo_original>
// kernel: tpu_custom_call.1
$region0: #{tpu_custom_call.1}
  #allocation0 [shape = 'u32[]', space=smem, size = 0x4, offset = 0x4, fixed_abs, tag = 'smem constant byte address 0x4 - core index']
  #allocation1 [shape = 'u32[144,128]{1,0:T(1,128)}', space=vmem, size = 0x12000, scoped, tag = 'internal scratch']
  %s0 = inlined_call_operand.hbm [shape: f32[4,128], index: 0, kind: input, shape index: {}, may-alias: {0,2}]
  %s1 = inlined_call_operand.vmem [shape: f32[1,128], index: 1, kind: input, shape index: {}]
  %s2 = inlined_call_operand.hbm [shape: f32[4,128], index: 2, kind: output, shape index: {}, may-alias: {0,2}]
  %s3 = sld [smem:[#allocation0]]
  $region22: #{tpu_custom_call.1} parent=0
    _
  %s5 = ssub.s32 1, %s3
  %s6 = scalar_select 0, %s5, %s3
  $region1: #{tpu_custom_call.1} parent=0
    #allocation2 [shape = 'u8[2048]{0}', space=vmem, size = 0x800, scoped, tag = 'input window, operand 0, single buffered']
    #allocation3 [shape = 's32[1]{0}', space=sflag, size = 0x4, scoped, tag = 'scoped memory for tpu_custom_call.1']
    #allocation4 [shape = 's32[1]{0}', space=sflag, size = 0x4, scoped, tag = 'scoped memory for tpu_custom_call.1']
    #allocation5 [shape = 'u8[2048]{0}', space=vmem, size = 0x800, scoped, tag = 'output window, operand 0, single buffered']
    %7 = vsyncpa [#allocation3], 0
    %8 = vsyncpa [#allocation4], 0
    // Predicated region
    $region2: #{tpu_custom_call.1} parent=1 // pred_check
      _
    $region3: #{tpu_custom_call.1} parent=1 // pred_check_branch
      %10 = sbr.rel (0) target = $region5
    $region4: #{tpu_custom_call.1} parent=1 // pred_region
      %s12 = ssub.s32 64, 64
      %13 = vsyncadd [#allocation3], %s12
      %s15 = sshll.u32 [#allocation2], 4
      %s16 = int_to_ptr.vmem [resolvable:$true] %s15
      %18 = dma.hbm_to_vmem [thread:$0]  %s0, 64, %s16, [#allocation3]
    $region5: #{tpu_custom_call.1} parent=1 // pred_fallthru
      _
    // Predicated region
    $region6: #{tpu_custom_call.1} parent=1 // pred_check
      _
    $region7: #{tpu_custom_call.1} parent=1 // pred_check_branch
      %20 = sbr.rel (0) target = $region9
    $region8: #{tpu_custom_call.1} parent=1 // pred_region
      _
    $region9: #{tpu_custom_call.1} parent=1 // pred_fallthru
      _
    // Predicated region
    $region10: #{tpu_custom_call.1} parent=1 // pred_check
      _
    $region11: #{tpu_custom_call.1} parent=1 // pred_check_branch
      %22 = sbr.rel (0) target = $region13
    $region12: #{tpu_custom_call.1} parent=1 // pred_region
      %23 = dma.done [#allocation3], 64
    $region13: #{tpu_custom_call.1} parent=1 // pred_fallthru
      _
    %v24 = vld [vmem:[#allocation2] sm:$0xf]
    %v25 = vld [vmem:[%s1] sm:$0x1]
    %v27 = vlaneseq
    %v28 = vshrl.u32 %v27, 7
    %v29 = vsub.s32 0, %v28
    %v30 = vrot.slane %v25, %v29
    %v32 = vadd.f32 %v24, %v30
    %33 = vst [vmem:[#allocation5] sm:$0xf] %v32
    // Predicated region
    $region14: #{tpu_custom_call.1} parent=1 // pred_check
      _
    $region15: #{tpu_custom_call.1} parent=1 // pred_check_branch
      %35 = sbr.rel (0) target = $region17
    $region16: #{tpu_custom_call.1} parent=1 // pred_region
      %s37 = ssub.s32 64, 64
      %38 = vsyncadd [#allocation4], %s37
      %s40 = sshll.u32 [#allocation5], 4
      %s41 = int_to_ptr.vmem [resolvable:$true] %s40
      %43 = dma.vmem_to_hbm [thread:$0]  %s41, 64, %s2, [#allocation4]
    $region17: #{tpu_custom_call.1} parent=1 // pred_fallthru
      _
    // Predicated region
    $region18: #{tpu_custom_call.1} parent=1 // pred_check
      _
    $region19: #{tpu_custom_call.1} parent=1 // pred_check_branch
      %45 = sbr.rel (0) target = $region21
    $region20: #{tpu_custom_call.1} parent=1 // pred_region
      %46 = dma.done [#allocation4], 64
    $region21: #{tpu_custom_call.1} parent=1 // pred_fallthru
      _
    %47 = vsyncpa [#allocation3], 1
    %48 = vsyncpa [#allocation4], 1

// kernel: tpu_custom_call.1
$region0: #{tpu_custom_call.1}
  #allocation0 [shape = 'u32[]', space=smem, size = 0x4, offset = 0x4, fixed_abs, tag = 'smem constant byte address 0x4 - core index']
  #allocation1 [shape = 'u32[144,128]{1,0:T(1,128)}', space=vmem, size = 0x12000, scoped, tag = 'internal scratch']
  %s0 = inlined_call_operand.hbm [shape: f32[4,128], index: 0, kind: input, shape index: {}, may-alias: {0,2}]
  %s1 = inlined_call_operand.vmem [shape: f32[1,128], index: 1, kind: input, shape index: {}]
  %s2 = inlined_call_operand.hbm [shape: f32[4,128], index: 2, kind: output, shape index: {}, may-alias: {0,2}]
  %s3 = sld [smem:[#allocation0]]
  $region22: #{tpu_custom_call.1} parent=0
    _
  %s5 = ssub.s32 1, %s3
  %s6 = scalar_select 0, %s5, %s3
  $region1: #{tpu_custom_call.1} parent=0
    #allocation2 [shape = 'u8[2048]{0}', space=vmem, size = 0x800, scoped, tag = 'input window, operand 0, single buffered']
    #allocation3 [shape = 's32[1]{0}', space=sflag, size = 0x4, scoped, tag = 'scoped memory for tpu_custom_call.1']
    #allocation4 [shape = 's32[1]{0}', space=sflag, size = 0x4, scoped, tag = 'scoped memory for tpu_custom_call.1']
    #allocation5 [shape = 'u8[2048]{0}', space=vmem, size = 0x800, scoped, tag = 'output window, operand 0, single buffered']
    %7 = vsyncpa [#allocation3], 0
    %8 = vsyncpa [#allocation4], 0
    // Predicated region
    $region2: #{tpu_custom_call.1} parent=1 // pred_check
      _
    $region3: #{tpu_custom_call.1} parent=1 // pred_check_branch
      %10 = sbr.rel (0) target = $region5
    $region4: #{tpu_custom_call.1} parent=1 // pred_region
      %s12 = ssub.s32 64, 64
      %13 = vsyncadd [#allocation3], %s12
      %s15 = sshll.u32 [#allocation2], 4
      %s16 = int_to_ptr.vmem [resolvable:$true] %s15
      %18 = dma.hbm_to_vmem [thread:$0]  %s0, 64, %s16, [#allocation3]
    $region5: #{tpu_custom_call.1} parent=1 // pred_fallthru
      _
    // Predicated region
    $region6: #{tpu_custom_call.1} parent=1 // pred_check
      _
    $region7: #{tpu_custom_call.1} parent=1 // pred_check_branch
      %20 = sbr.rel (0) target = $region9
    $region8: #{tpu_custom_call.1} parent=1 // pred_region
      _
    $region9: #{tpu_custom_call.1} parent=1 // pred_fallthru
      _
    // Predicated region
    $region10: #{tpu_custom_call.1} parent=1 // pred_check
      _
    $region11: #{tpu_custom_call.1} parent=1 // pred_check_branch
      %22 = sbr.rel (0) target = $region13
    $region12: #{tpu_custom_call.1} parent=1 // pred_region
      %23 = dma.done [#allocation3], 64
    $region13: #{tpu_custom_call.1} parent=1 // pred_fallthru
      _
    %v24 = vld [vmem:[#allocation2] sm:$0xf]
    %v25 = vld [vmem:[%s1] sm:$0x1]
    %v27 = vlaneseq
    %v28 = vshrl.u32 %v27, 7
    %v29 = vsub.s32 0, %v28
    %v30 = vrot.slane %v25, %v29
    %v32 = vadd.f32 %v24, %v30
    %33 = vst [vmem:[#allocation5] sm:$0xf] %v32
    // Predicated region
    $region14: #{tpu_custom_call.1} parent=1 // pred_check
      _
    $region15: #{tpu_custom_call.1} parent=1 // pred_check_branch
      %35 = sbr.rel (0) target = $region17
    $region16: #{tpu_custom_call.1} parent=1 // pred_region
      %s37 = ssub.s32 64, 64
      %38 = vsyncadd [#allocation4], %s37
      %s40 = sshll.u32 [#allocation5], 4
      %s41 = int_to_ptr.vmem [resolvable:$true] %s40
      %43 = dma.vmem_to_hbm [thread:$0]  %s41, 64, %s2, [#allocation4]
    $region17: #{tpu_custom_call.1} parent=1 // pred_fallthru
      _
    // Predicated region
    $region18: #{tpu_custom_call.1} parent=1 // pred_check
      _
    $region19: #{tpu_custom_call.1} parent=1 // pred_check_branch
      %45 = sbr.rel (0) target = $region21
    $region20: #{tpu_custom_call.1} parent=1 // pred_region
      %46 = dma.done [#allocation4], 64
    $region21: #{tpu_custom_call.1} parent=1 // pred_fallthru
      _
    %47 = vsyncpa [#allocation3], 1
    %48 = vsyncpa [#allocation4], 1

</llo_original>
